<compile_context>
chip_gen: v7x
topology: tpu7x:2x2x1
jax: 0.10.0
libtpu: 0.0.40
codegen_flags: <defaults>
</compile_context>

<pallas_src>
import jax
import jax.numpy as jnp
from jax import lax
from jax.experimental import pallas as pl
from jax.experimental.pallas import tpu as pltpu

_LANES = 128
_VMEM_LIMIT = 32 * 1024 * 1024   # safe scoped-VMEM budget on v5e/v6e/v7x
# TODO(synk): on v5e/v6e (128 MiB physical VMEM) this limit + tile sizes may be
#             raised further if profiling still shows exposed DMA.


# ----------------------------------------------------------------------------
# Small static helpers
# ----------------------------------------------------------------------------
def _pick_chunk(tile_rows, prefer):
    """Largest row-chunk (multiple of 8) that divides tile_rows, capped at `prefer`."""
    for c in (prefer, 64, 32, 16, 8):
        if c <= tile_rows and tile_rows % c == 0:
            return c
    return tile_rows


def _tile_rows(n_rows, max_tile_rows):
    """Sublane-align the row count and pick a tile giving >= 2 grid steps when possible."""
    rows8 = -(-n_rows // 8) * 8
    tile = min(max_tile_rows, max(8, (rows8 // 2) // 8 * 8))
    rows_padded = -(-rows8 // tile) * tile
    return rows_padded, tile


# ----------------------------------------------------------------------------
# Fused reduction kernels (feature matching / adversarial)
# ----------------------------------------------------------------------------
def _weighted_abs_diff_kernel(a_ref, b_ref, w_ref, o_ref):
    # sum_i mean(|a_i - b_i|) expressed as sum(w_row * |A - B|), w_row = 1/numel_i.
    tile_rows = a_ref.shape[0]
    chunk = _pick_chunk(tile_rows, 64)
    n_chunks = tile_rows // chunk

    def body(c, acc):
        start = pl.multiple_of(c * chunk, chunk)
        a = a_ref[pl.ds(start, chunk), :]
        b = b_ref[pl.ds(start, chunk), :]
        w = w_ref[pl.ds(start, chunk), :]            # (chunk, 1) broadcast over lanes
        v = w * jnp.abs(a - b)
        part = v[0:8, :]
        for j in range(1, chunk // 8):
            part = part + v[8 * j:8 * (j + 1), :]
        return acc + part

    o_ref[...] = lax.fori_loop(0, n_chunks, body,
                               jnp.zeros((8, _LANES), jnp.float32))


def _weighted_sq_one_minus_kernel(x_ref, w_ref, o_ref):
    # sum_i mean((1 - x_i)^2) expressed as sum(w_row * (1 - X)^2).
    tile_rows = x_ref.shape[0]
    chunk = _pick_chunk(tile_rows, 64)
    n_chunks = tile_rows // chunk

    def body(c, acc):
        start = pl.multiple_of(c * chunk, chunk)
        x = x_ref[pl.ds(start, chunk), :]
        w = w_ref[pl.ds(start, chunk), :]
        d = 1.0 - x
        v = w * d * d
        part = v[0:8, :]
        for j in range(1, chunk // 8):
            part = part + v[8 * j:8 * (j + 1), :]
        return acc + part

    o_ref[...] = lax.fori_loop(0, n_chunks, body,
                               jnp.zeros((8, _LANES), jnp.float32))


# ----------------------------------------------------------------------------
# Packing helpers (wrapper-side glue)
# ----------------------------------------------------------------------------
def _flat_f32(t):
    t = t.reshape(-1)
    # TODO(synk): for very large feature maps, keep tensors in place in their native
    #             dtype (memory_space=pl.ANY + scalar-prefetch segment offsets) instead
    #             of this concat/pad round-trip; at toy sizes the copy is negligible.
    return t.astype(jnp.float32) if t.dtype != jnp.float32 else t


def _pack_segments(tensors, fill):
    """Pad each tensor to a 128-multiple so its 1/numel weight is constant per row."""
    segs, w_segs = [], []
    for t in tensors:
        flat = _flat_f32(t)
        n = flat.shape[0]
        pad = (-n) % _LANES
        segs.append(jnp.pad(flat, (0, pad), constant_values=fill))
        w_segs.append(jnp.full(((n + pad) // _LANES,), 1.0 / n, jnp.float32))
    return jnp.concatenate(segs), jnp.concatenate(w_segs)


def _reduction_common(kernel, data_arrays, w, rows, tile, n_inputs_bytes):
    num_tiles = rows // tile
    in_specs = ([pl.BlockSpec((tile, _LANES), lambda i: (i, 0)) for _ in data_arrays]
                + [pl.BlockSpec((tile, 1), lambda i: (i, 0))])
    partials = pl.pallas_call(
        kernel,
        out_shape=jax.ShapeDtypeStruct((num_tiles * 8, _LANES), jnp.float32),
        grid=(num_tiles,),
        in_specs=in_specs,
        out_specs=pl.BlockSpec((8, _LANES), lambda i: (i, 0)),
        compiler_params=pltpu.CompilerParams(
            dimension_semantics=("parallel",),
            vmem_limit_bytes=_VMEM_LIMIT),
        cost_estimate=pl.CostEstimate(
            flops=4 * rows * _LANES, transcendentals=0,
            bytes_accessed=n_inputs_bytes + 4 * (rows + num_tiles * 8 * _LANES)),
    )(*data_arrays, w)
    return jnp.sum(partials)


def fused_feature_matching_loss(pairs, *, max_tile_rows=4096):
    """sum over all (gen, real) tensor pairs of mean(|gen - real|) — one pallas_call."""
    a, w = _pack_segments([g for g, _ in pairs], fill=0.0)
    b, _ = _pack_segments([r for _, r in pairs], fill=0.0)
    n_rows = a.shape[0] // _LANES
    rows, tile = _tile_rows(n_rows, max_tile_rows)
    A = jnp.pad(a, (0, rows * _LANES - a.shape[0])).reshape(rows, _LANES)
    B = jnp.pad(b, (0, rows * _LANES - b.shape[0])).reshape(rows, _LANES)
    W = jnp.pad(w, (0, rows - w.shape[0])).reshape(rows, 1)
    return _reduction_common(_weighted_abs_diff_kernel, (A, B), W, rows, tile,
                             n_inputs_bytes=4 * 2 * rows * _LANES)


def fused_adversarial_loss(score_tensors, *, max_tile_rows=4096):
    """sum over all score tensors of mean((1 - x)^2) — one pallas_call."""
    # fill=1.0 so padded elements contribute (1-1)^2 = 0 regardless of the row weight.
    x, w = _pack_segments(list(score_tensors), fill=1.0)
    n_rows = x.shape[0] // _LANES
    rows, tile = _tile_rows(n_rows, max_tile_rows)
    X = jnp.pad(x, (0, rows * _LANES - x.shape[0]), constant_values=1.0).reshape(rows, _LANES)
    W = jnp.pad(w, (0, rows - w.shape[0])).reshape(rows, 1)
    return _reduction_common(_weighted_sq_one_minus_kernel, (X,), W, rows, tile,
                             n_inputs_bytes=4 * rows * _LANES)


# ----------------------------------------------------------------------------
# Mel-spectrogram + fused L1 loss kernel (the matmul hot path)
# ----------------------------------------------------------------------------
def _mel_l1_kernel(frames_ref, dft_ref, fb_ref, tgt_ref, rmask_ref, o_ref):
    # frames: (tile_f, n_fft) f32 ; dft: (n_fft, npad) f32 with the hann window folded
    # into its rows and [real | imag] columns side by side; fb: (npad, n_mels) f32
    # mapping re^2/im^2 rows onto mel bins; tgt: (tile_f, n_mels); rmask: (tile_f, 1).
    tile_f = frames_ref.shape[0]
    n_mels = tgt_ref.shape[1]
    chunk = _pick_chunk(tile_f, 128)
    n_chunks = tile_f // chunk
    dft = dft_ref[...]
    fb = fb_ref[...]

    def body(c, acc):
        start = pl.multiple_of(c * chunk, chunk)
        fr = frames_ref[pl.ds(start, chunk), :]
        z = jnp.dot(fr, dft, preferred_element_type=jnp.float32)
        power = z * z                                            # re^2 / im^2
        mel = jnp.dot(power, fb, preferred_element_type=jnp.float32)
        log_mel = jnp.log(jnp.maximum(mel, 1e-5))
        tgt = tgt_ref[pl.ds(start, chunk), :]
        m = rmask_ref[pl.ds(start, chunk), :]                    # per-row validity
        v = m * jnp.abs(log_mel - tgt)
        part = v[0:8, :]
        for j in range(1, chunk // 8):
            part = part + v[8 * j:8 * (j + 1), :]
        return acc + part

    o_ref[...] = lax.fori_loop(0, n_chunks, body,
                               jnp.zeros((8, n_mels), jnp.float32))


def _hz_to_mel(f):
    return 2595.0 * jnp.log10(1.0 + f / 700.0)


def _mel_to_hz(m):
    return 700.0 * (10.0 ** (m / 2595.0) - 1.0)


def _build_mel_consts(n_fft, n_mels, sample_rate):
    n_freq = n_fft // 2 + 1
    npad = -(-2 * n_freq // _LANES) * _LANES        # [real | imag], lane-padded

    n = jnp.arange(n_fft, dtype=jnp.float32)
    k = jnp.arange(n_freq, dtype=jnp.float32)
    ang = -2.0 * jnp.pi * n[:, None] * k[None, :] / n_fft
    window = 0.5 - 0.5 * jnp.cos(2.0 * jnp.pi * n / n_fft)
    dft = jnp.zeros((n_fft, npad), jnp.float32)
    dft = dft.at[:, :n_freq].set(window[:, None] * jnp.cos(ang))
    dft = dft.at[:, n_freq:2 * n_freq].set(window[:, None] * jnp.sin(ang))
    # TODO(synk): at production STFT sizes cast dft (and the power operand) to bf16
    #             and 256-tile the N dimension for the v6e/v7x MXU.

    freqs = jnp.linspace(0.0, sample_rate / 2.0, n_freq)
    m_pts = jnp.linspace(_hz_to_mel(0.0), _hz_to_mel(sample_rate / 2.0), n_mels + 2)
    f_pts = _mel_to_hz(m_pts)
    lower = (freqs[:, None] - f_pts[None, :-2]) / (f_pts[1:-1] - f_pts[:-2])[None, :]
    upper = (f_pts[None, 2:] - freqs[:, None]) / (f_pts[2:] - f_pts[1:-1])[None, :]
    fb = jnp.maximum(0.0, jnp.minimum(lower, upper)).astype(jnp.float32)   # (n_freq, n_mels)
    fb_ext = jnp.zeros((npad, n_mels), jnp.float32)
    fb_ext = fb_ext.at[:n_freq, :].set(fb)            # real^2 rows
    fb_ext = fb_ext.at[n_freq:2 * n_freq, :].set(fb)  # imag^2 rows
    return dft, fb_ext


def mel_l1_loss(y, spectrogram, *, n_fft=64, hop=32, n_mels=16, sample_rate=4000,
                max_frame_tile=2048):
    """mean |log-mel(y)[..., :T_spec] - spectrogram| with the mel computation and the
    masked L1 reduction fused into a single frame-tiled pallas_call."""
    B, C, T = y.shape
    assert C == 1 and T >= n_fft
    n_frames = (T - n_fft) // hop + 1
    t_spec = spectrogram.shape[-1]
    assert t_spec <= n_frames, "target spectrogram has more frames than generated audio"

    dft_c, fb = _build_mel_consts(n_fft, n_mels, sample_rate)
    npad = dft_c.shape[1]

    # Framing (wrapper glue).
    # TODO(synk): for long audio, frame in-kernel from a VMEM-resident audio block using
    #             ref[pl.ds(f*hop, n_fft)] to avoid the 2x overlapped-gather HBM traffic.
    idx = hop * jnp.arange(n_frames)[:, None] + jnp.arange(n_fft)[None, :]
    frames = y[:, 0, :][:, idx].reshape(B * n_frames, n_fft).astype(jnp.float32)

    f_total = B * n_frames
    f_pad, tile_f = _tile_rows(f_total, max_frame_tile)
    num_tiles = f_pad // tile_f
    frames = jnp.pad(frames, ((0, f_pad - f_total), (0, 0)))

    # Target frame-major at its native n_mels lane width; per-row validity as a tiny column.
    tgt = jnp.transpose(spectrogram[:, 0, :, :], (0, 2, 1)).astype(jnp.float32)  # (B, t_spec, n_mels)
    tgt_full = jnp.zeros((B, n_frames, n_mels), jnp.float32).at[:, :t_spec, :].set(tgt)
    tgt2 = jnp.pad(tgt_full.reshape(f_total, n_mels), ((0, f_pad - f_total), (0, 0)))
    rmask = jnp.zeros((B, n_frames), jnp.float32).at[:, :t_spec].set(1.0)
    rmask = jnp.pad(rmask.reshape(f_total, 1), ((0, f_pad - f_total), (0, 0)))

    flops = 2 * f_pad * n_fft * npad + 2 * f_pad * npad * n_mels + 6 * f_pad * n_mels
    bytes_accessed = 4 * (frames.size + dft_c.size + fb.size + tgt2.size + rmask.size
                          + num_tiles * 8 * n_mels)

    partials = pl.pallas_call(
        _mel_l1_kernel,
        out_shape=jax.ShapeDtypeStruct((num_tiles * 8, n_mels), jnp.float32),
        grid=(num_tiles,),
        in_specs=[
            pl.BlockSpec((tile_f, n_fft), lambda i: (i, 0)),
            pl.BlockSpec((n_fft, npad), lambda i: (0, 0)),
            pl.BlockSpec((npad, n_mels), lambda i: (0, 0)),
            pl.BlockSpec((tile_f, n_mels), lambda i: (i, 0)),
            pl.BlockSpec((tile_f, 1), lambda i: (i, 0)),
        ],
        out_specs=pl.BlockSpec((8, n_mels), lambda i: (i, 0)),
        compiler_params=pltpu.CompilerParams(
            dimension_semantics=("parallel",),
            vmem_limit_bytes=_VMEM_LIMIT),
        cost_estimate=pl.CostEstimate(flops=flops, transcendentals=f_pad * n_mels,
                                      bytes_accessed=bytes_accessed),
    )(frames, dft_c, fb, tgt2, rmask)
    return jnp.sum(partials) / jnp.float32(B * n_mels * t_spec)


# ----------------------------------------------------------------------------
# GeneratorLoss
# ----------------------------------------------------------------------------
class GeneratorLoss:
    """HiFi-GAN style generator adversarial loss, Pallas TPU backed."""

    def __init__(self, features_loss_weight=2.0, mel_loss_weight=45.0):
        self.features_loss_weight = features_loss_weight
        self.mel_loss_weight = mel_loss_weight

    def __call__(self, msd_score_gen, mpd_score_gen,
                 msd_features_gen, msd_features_real,
                 mpd_features_gen, mpd_features_real,
                 y_gen, spectrogram, **batch):
        # Every (gen, real) feature pair from both discriminators -> ONE kernel.
        pairs = []
        for feats_gen, feats_real in ((msd_features_gen, msd_features_real),
                                      (mpd_features_gen, mpd_features_real)):
            for block_gen, block_real in zip(feats_gen, feats_real):
                for fg, fr in zip(block_gen, block_real):
                    pairs.append((fg, fr))
        discriminator_features_loss = (fused_feature_matching_loss(pairs)
                                       * self.features_loss_weight)

        # All adversarial score tensors -> ONE kernel.
        scores = list(msd_score_gen) + list(mpd_score_gen)
        generator_loss = fused_adversarial_loss(scores)

        # Mel-spectrogram + L1 against target, fused -> ONE kernel.
        # TODO(synk): synthetic MelSpectrogram stand-in; match the real config if it
        #             specifies center-padding / normalized filterbank / power=1.
        mel_loss = mel_l1_loss(y_gen, spectrogram) * self.mel_loss_weight

        return {
            "full_generator_loss": discriminator_features_loss + generator_loss + mel_loss,
            "discriminator_features_loss": discriminator_features_loss,
            "generator_loss": generator_loss,
            "mel_loss": mel_loss,
        }


# ----------------------------------------------------------------------------
# Example run
# ----------------------------------------------------------------------------
if __name__ == "__main__":
    key = jax.random.PRNGKey(0)
    ks = iter(jax.random.split(key, 64))

    B = 2
    T = 256            # audio length
    n_mels = 16
    n_fft, hop = 64, 32
    n_frames_full = (T - n_fft) // hop + 1   # 7
    T_spec = 5                               # target spectrogram shorter -> exercises masking

    # discriminator scores (lists of tensors)
    msd_score_gen = [jax.random.normal(next(ks), (B, 1, 48), jnp.float32),
                     jax.random.normal(next(ks), (B, 1, 24), jnp.float32),
                     jax.random.normal(next(ks), (B, 1, 12), jnp.float32)]
    mpd_score_gen = [jax.random.normal(next(ks), (B, 1, 20), jnp.float32),
                     jax.random.normal(next(ks), (B, 1, 15), jnp.float32)]

    # discriminator features (lists of lists of tensors)
    def make_feats(shapes):
        return [[jax.random.normal(next(ks), s, jnp.float32) for s in block] for block in shapes]

    msd_shapes = [[(B, 4, 64), (B, 8, 32)], [(B, 4, 32), (B, 8, 16)], [(B, 4, 16)]]
    mpd_shapes = [[(B, 4, 8, 5), (B, 8, 4, 5)], [(B, 4, 8, 3)]]
    msd_features_gen = make_feats(msd_shapes)
    msd_features_real = make_feats(msd_shapes)
    mpd_features_gen = make_feats(mpd_shapes)
    mpd_features_real = make_feats(mpd_shapes)

    # generated audio and target spectrogram
    y_gen = jax.random.normal(next(ks), (B, 1, T), jnp.float32)
    spectrogram = jax.random.normal(next(ks), (B, 1, n_mels, T_spec), jnp.float32)

    loss_fn = GeneratorLoss()
    losses = loss_fn(msd_score_gen, mpd_score_gen,
                     msd_features_gen, msd_features_real,
                     mpd_features_gen, mpd_features_real,
                     y_gen, spectrogram)

    losses = {k: jax.block_until_ready(v) for k, v in losses.items()}
    assert all(bool(jnp.isfinite(v)) for v in losses.values())
    print("KERNEL_OK")
</pallas_src>

<mosaic_0001>
module attributes {stable_mosaic.version = 11 : i64} {
  func.func @_weighted_abs_diff_kernel(%arg0: i32, %arg1: memref<8x128xf32, #tpu.memory_space<vmem>>, %arg2: memref<8x128xf32, #tpu.memory_space<vmem>>, %arg3: memref<8x1xf32, #tpu.memory_space<vmem>>, %arg4: memref<8x128xf32, #tpu.memory_space<vmem>>) attributes {dimension_semantics = [#tpu.dimension_semantics<parallel>], iteration_bounds = array<i64: 3>, scalar_prefetch = 0 : i64, scratch_operands = 0 : i64, tpu.core_type = #tpu.core_type<tc>, window_params = [{transform_indices = @transform_0, window_bounds = array<i64: 8, 128>}, {transform_indices = @transform_1, window_bounds = array<i64: 8, 128>}, {transform_indices = @transform_2, window_bounds = array<i64: 8, 1>}, {transform_indices = @transform_3, window_bounds = array<i64: 8, 128>}]} {
    %cst = arith.constant 0.000000e+00 : f32
    %0 = vector.broadcast %cst : f32 to vector<8x128xf32>
    %c0_i32 = arith.constant 0 : i32
    %c8_i32 = arith.constant 8 : i32
    %1 = arith.muli %c0_i32, %c8_i32 : i32
    %2 = tpu.assume_multiple %1, 8 : i32
    %3 = arith.index_cast %2 : i32 to index
    %c0 = arith.constant 0 : index
    %4 = vector.load %arg1[%3, %c0] : memref<8x128xf32, #tpu.memory_space<vmem>>, vector<8x128xf32>
    %5 = arith.index_cast %2 : i32 to index
    %c0_0 = arith.constant 0 : index
    %6 = vector.load %arg2[%5, %c0_0] : memref<8x128xf32, #tpu.memory_space<vmem>>, vector<8x128xf32>
    %7 = arith.index_cast %2 : i32 to index
    %c0_1 = arith.constant 0 : index
    %8 = vector.load %arg3[%7, %c0_1] : memref<8x1xf32, #tpu.memory_space<vmem>>, vector<8x1xf32>
    %9 = arith.subf %4, %6 : vector<8x128xf32>
    %10 = math.absf %9 : vector<8x128xf32>
    %11 = vector.broadcast %8 : vector<8x1xf32> to vector<8x128xf32>
    %12 = arith.mulf %11, %10 : vector<8x128xf32>
    %13 = arith.addf %0, %12 : vector<8x128xf32>
    %c1_i32 = arith.constant 1 : i32
    %c0_2 = arith.constant 0 : index
    %c0_3 = arith.constant 0 : index
    %14 = vector.load %arg4[%c0_2, %c0_3] : memref<8x128xf32, #tpu.memory_space<vmem>>, vector<8x128xf32>
    tpu.vector_store %arg4[%c0_2, %c0_3], %13 {strides = array<i32>} : memref<8x128xf32, #tpu.memory_space<vmem>>, vector<8x128xf32>,
    return
  }
  func.func @transform_0(%arg0: i32) -> (i32, i32) {
    %c0_i32 = arith.constant 0 : i32
    %c0_i32_0 = arith.constant 0 : i32
    return %arg0, %c0_i32 : i32, i32
  }
  func.func @transform_1(%arg0: i32) -> (i32, i32) {
    %c0_i32 = arith.constant 0 : i32
    %c0_i32_0 = arith.constant 0 : i32
    return %arg0, %c0_i32 : i32, i32
  }
  func.func @transform_2(%arg0: i32) -> (i32, i32) {
    %c0_i32 = arith.constant 0 : i32
    %c0_i32_0 = arith.constant 0 : i32
    return %arg0, %c0_i32 : i32, i32
  }
  func.func @transform_3(%arg0: i32) -> (i32, i32) {
    %c0_i32 = arith.constant 0 : i32
    %c0_i32_0 = arith.constant 0 : i32
    return %arg0, %c0_i32 : i32, i32
  }
}

</mosaic_0001>

<llo_original>
// kernel: tpu_custom_call.1
$region0: #{tpu_custom_call.1}
  #allocation0 [shape = 'u32[]', space=smem, size = 0x4, offset = 0x4, fixed_abs, tag = 'smem constant byte address 0x4 - core index']
  #allocation1 [shape = 'u32[144,128]{1,0:T(1,128)}', space=vmem, size = 0x12000, scoped, tag = 'internal scratch']
  %s0 = inlined_call_operand.vmem [shape: f32[24,128], index: 0, kind: input, shape index: {}]
  %s1 = inlined_call_operand.hbm [shape: f32[24,128], index: 1, kind: input, shape index: {}]
  %s2 = inlined_call_operand.vmem [shape: f32[24,1], index: 2, kind: input, shape index: {}]
  %s3 = inlined_call_operand.hbm [shape: f32[24,128], index: 3, kind: output, shape index: {}]
  %s4 = sld [smem:[#allocation0]]
  $region49: #{tpu_custom_call.1} parent=0
    _
  %s6 = ssub.s32 1, %s4
  %s7 = scalar_select 0, %s6, %s4
  $region1: #{tpu_custom_call.1} parent=0
    #allocation2 [shape = 'u8[8192]{0}', space=vmem, size = 0x2000, scoped, tag = 'input window, operand 1']
    #allocation3 [shape = 's32[2]{0}', space=sflag, size = 0x8, scoped, tag = 'scoped memory for tpu_custom_call.1']
    #allocation4 [shape = 's32[2]{0}', space=sflag, size = 0x8, scoped, tag = 'scoped memory for tpu_custom_call.1']
    #allocation5 [shape = 'u8[8192]{0}', space=vmem, size = 0x2000, scoped, tag = 'output window, operand 0']
    %8 = vsyncpa [#allocation3], 0
    %s9 = scalar_lea.sflag [#allocation3], 1
    %10 = vsyncpa %s9, 0
    %11 = vsyncpa [#allocation4], 0
    %s12 = scalar_lea.sflag [#allocation4], 1
    %13 = vsyncpa %s12, 0
    loop: start=0, step=1, limit=5
    $region2: #{tpu_custom_call.1} parent=1 // loop_pre_header
      _
    $region3: #{tpu_custom_call.1} parent=1 // loop_header
      %s15 = sphi 0, %s19
      %p16 = scmp.ge.s32.totalorder %s15, 5
      %s25 = sphi 0, %s27
      %s28 = sphi 0, %s25
      %s29 = sphi 0, %s28
      %s45 = sphi 0, %s29
      %s51 = sphi 0, %s53
      %s54 = sphi 0, %s51
      %s55 = sphi 0, %s54
      %s71 = sphi 0, %s55
      %s77 = sphi 0, %s79
      %s80 = sphi 0, %s77
      %s81 = sphi 0, %s80
      %s97 = sphi 0, %s81
      %s103 = sphi 0, %s105
      %s106 = sphi 0, %s103
      %s107 = sphi 0, %s106
      %s123 = sphi 0, %s107
    $region4: #{tpu_custom_call.1} parent=1 // loop_header_branch
      %18 = sbr.rel (%p16) target = $region8
    $region5: #{tpu_custom_call.1} parent=1 // loop_body
      %s20 = ssub.s32 %s15, 1
      %s21 = ssub.s32 %s15, 2
      %s22 = sadd.s32 %s15, 1
      %s23 = ssub.s32 %s15, %s22
      %p24 = scmp.eq.s32.totalorder %s23, 0
      %s26 = sadd.s32 %s25, 1
      %s27 = scalar_select %p24, %s25, %s26
      %p30 = pneg %p24
      %p31 = scmp.eq.s32.totalorder %s15, 2
      %p32 = por %p30, %p31
      %p33 = scmp.ne.s32.totalorder %s25, %s28
      %p34 = scmp.eq.s32.totalorder %s15, 0
      %p35 = por %p33, %p34
      %p36 = scmp.ne.s32.totalorder %s25, %s28
      %p37 = scmp.eq.s32.totalorder %s20, 2
      %p38 = por %p36, %p37
      %p39 = scmp.ne.s32.totalorder %s28, %s29
      %p40 = scmp.eq.s32.totalorder %s20, 0
      %p41 = por %p39, %p40
      %p42 = scmp.ne.s32.totalorder %s28, %s29
      %p43 = scmp.eq.s32.totalorder %s21, 2
      %p44 = por %p42, %p43
      %p46 = scmp.ne.s32.totalorder %s29, %s45
      %p47 = scmp.eq.s32.totalorder %s21, 0
      %p48 = por %p46, %p47
      %s49 = ssub.s32 %s15, %s22
      %p50 = scmp.eq.s32.totalorder %s49, 0
      %s52 = sadd.s32 %s51, 1
      %s53 = scalar_select %p50, %s51, %s52
      %p56 = pneg %p50
      %p57 = scmp.eq.s32.totalorder %s15, 2
      %p58 = por %p56, %p57
      %p59 = scmp.ne.s32.totalorder %s51, %s54
      %p60 = scmp.eq.s32.totalorder %s15, 0
      %p61 = por %p59, %p60
      %p62 = scmp.ne.s32.totalorder %s51, %s54
      %p63 = scmp.eq.s32.totalorder %s20, 2
      %p64 = por %p62, %p63
      %p65 = scmp.ne.s32.totalorder %s54, %s55
      %p66 = scmp.eq.s32.totalorder %s20, 0
      %p67 = por %p65, %p66
      %p68 = scmp.ne.s32.totalorder %s54, %s55
      %p69 = scmp.eq.s32.totalorder %s21, 2
      %p70 = por %p68, %p69
      %p72 = scmp.ne.s32.totalorder %s55, %s71
      %p73 = scmp.eq.s32.totalorder %s21, 0
      %p74 = por %p72, %p73
      %s75 = ssub.s32 %s15, %s22
      %p76 = scmp.eq.s32.totalorder %s75, 0
      %s78 = sadd.s32 %s77, 1
      %s79 = scalar_select %p76, %s77, %s78
      %p82 = pneg %p76
      %p83 = scmp.eq.s32.totalorder %s15, 2
      %p84 = por %p82, %p83
      %p85 = scmp.ne.s32.totalorder %s77, %s80
      %p86 = scmp.eq.s32.totalorder %s15, 0
      %p87 = por %p85, %p86
      %p88 = scmp.ne.s32.totalorder %s77, %s80
      %p89 = scmp.eq.s32.totalorder %s20, 2
      %p90 = por %p88, %p89
      %p91 = scmp.ne.s32.totalorder %s80, %s81
      %p92 = scmp.eq.s32.totalorder %s20, 0
      %p93 = por %p91, %p92
      %p94 = scmp.ne.s32.totalorder %s80, %s81
      %p95 = scmp.eq.s32.totalorder %s21, 2
      %p96 = por %p94, %p95
      %p98 = scmp.ne.s32.totalorder %s81, %s97
      %p99 = scmp.eq.s32.totalorder %s21, 0
      %p100 = por %p98, %p99
      %s101 = ssub.s32 %s15, %s22
      %p102 = scmp.eq.s32.totalorder %s101, 0
      %s104 = sadd.s32 %s103, 1
      %s105 = scalar_select %p102, %s103, %s104
      %p108 = pneg %p102
      %p109 = scmp.eq.s32.totalorder %s15, 2
      %p110 = por %p108, %p109
      %p111 = scmp.ne.s32.totalorder %s103, %s106
      %p112 = scmp.eq.s32.totalorder %s15, 0
      %p113 = por %p111, %p112
      %p114 = scmp.ne.s32.totalorder %s103, %s106
      %p115 = scmp.eq.s32.totalorder %s20, 2
      %p116 = por %p114, %p115
      %p117 = scmp.ne.s32.totalorder %s106, %s107
      %p118 = scmp.eq.s32.totalorder %s20, 0
      %p119 = por %p117, %p118
      %p120 = scmp.ne.s32.totalorder %s106, %s107
      %p121 = scmp.eq.s32.totalorder %s21, 2
      %p122 = por %p120, %p121
      %p124 = scmp.ne.s32.totalorder %s107, %s123
      %p125 = scmp.eq.s32.totalorder %s21, 0
      %p126 = por %p124, %p125
      %p127 = scmp.le.s32.totalorder 1, %s15
      %p128 = scmp.lt.s32.totalorder %s15, 4
      %p129 = pnand %p127, %p128
      %p130 = pneg %p129
      // Predicated region
      $region9: #{tpu_custom_call.1} parent=5 // pred_check
        _
      $region10: #{tpu_custom_call.1} parent=5 // pred_check_branch
        %132 = sbr.rel (%p129) target = $region12
      $region11: #{tpu_custom_call.1} parent=5 // pred_region
        %s133 = ssub.s32 %s15, 1
      $region12: #{tpu_custom_call.1} parent=5 // pred_fallthru
        _
      %p134 = scmp.lt.s32.totalorder %s15, 3
      // Predicated region
      $region13: #{tpu_custom_call.1} parent=5 // pred_check
        %p135 = pneg %p134
      $region14: #{tpu_custom_call.1} parent=5 // pred_check_branch
        %137 = sbr.rel (%p135) target = $region16
      $region15: #{tpu_custom_call.1} parent=5 // pred_region
        // Predicated region
        $region17: #{tpu_custom_call.1} parent=15 // pred_check
          %p138 = pneg %p35
        $region18: #{tpu_custom_call.1} parent=15 // pred_check_branch
          %140 = sbr.rel (%p138) target = $region20
        $region19: #{tpu_custom_call.1} parent=15 // pred_region
          %p141 = scmp.lt.s32.totalorder %s15, 2
          %s142 = scalar_select %p141, %s15, 2
          %s143 = smul.addr %s142, 8
          %s144 = scalar_lea.vmem %s0, %s143
        $region20: #{tpu_custom_call.1} parent=15 // pred_fallthru
          _
        // Predicated region
        $region21: #{tpu_custom_call.1} parent=15 // pred_check
          %p145 = pneg %p61
        $region22: #{tpu_custom_call.1} parent=15 // pred_check_branch
          %147 = sbr.rel (%p145) target = $region24
        $region23: #{tpu_custom_call.1} parent=15 // pred_region
          %s148 = sand.u32 %s51, 1
          %s149 = scalar_lea.sflag [#allocation3], %s148
          %s150 = sand.u32 %s51, 1
          %s151 = smul.addr %s150, 8
          %s152 = scalar_lea.vmem [#allocation2], %s151
          %s154 = ssub.s32 128, 128
          %155 = vsyncadd %s149, %s154
          %s156 = smul.addr %s15, 128
          %s157 = scalar_lea.hbm %s1, %s156
          %s159 = sshll.u32 %s152, 4
          %s160 = int_to_ptr.vmem [resolvable:$true] %s159
          %162 = dma.hbm_to_vmem [thread:$0]  %s157, 128, %s160, %s149
        $region24: #{tpu_custom_call.1} parent=15 // pred_fallthru
          _
        // Predicated region
        $region25: #{tpu_custom_call.1} parent=15 // pred_check
          %p163 = pneg %p87
        $region26: #{tpu_custom_call.1} parent=15 // pred_check_branch
          %165 = sbr.rel (%p163) target = $region28
        $region27: #{tpu_custom_call.1} parent=15 // pred_region
          %p166 = scmp.lt.s32.totalorder %s15, 2
          %s167 = scalar_select %p166, %s15, 2
          %s168 = smul.addr %s167, 8
          %s169 = scalar_lea.vmem %s2, %s168
        $region28: #{tpu_custom_call.1} parent=15 // pred_fallthru
          _
      $region16: #{tpu_custom_call.1} parent=5 // pred_fallthru
        _
      %p170 = scmp.le.s32.totalorder 1, %s15
      %p171 = scmp.lt.s32.totalorder %s15, 4
      %p172 = pnand %p170, %p171
      %p173 = pneg %p172
      // Predicated region
      $region29: #{tpu_custom_call.1} parent=5 // pred_check
        _
      $region30: #{tpu_custom_call.1} parent=5 // pred_check_branch
        %175 = sbr.rel (%p172) target = $region32
      $region31: #{tpu_custom_call.1} parent=5 // pred_region
        %s176 = ssub.s32 %s15, 1
        %s177 = sand.u32 %s54, 1
        %s178 = scalar_lea.sflag [#allocation3], %s177
        %s179 = sand.u32 %s54, 1
        %s180 = smul.addr %s179, 8
        %s181 = scalar_lea.vmem [#allocation2], %s180
        // Predicated region
        $region33: #{tpu_custom_call.1} parent=31 // pred_check
          %p182 = pneg %p67
        $region34: #{tpu_custom_call.1} parent=31 // pred_check_branch
          %184 = sbr.rel (%p182) target = $region36
        $region35: #{tpu_custom_call.1} parent=31 // pred_region
          %185 = dma.done %s178, 128
        $region36: #{tpu_custom_call.1} parent=31 // pred_fallthru
          _
        %p186 = scmp.lt.s32.totalorder %s20, 2
        %s187 = scalar_select %p186, %s20, 2
        %s188 = smul.addr %s187, 8
        %s189 = scalar_lea.vmem %s0, %s188
        %p190 = pneg %p41
        %p191 = pneg %p38
        %s192 = sand.u32 %s54, 1
        %s193 = scalar_lea.sflag [#allocation3], %s192
        %s194 = sand.u32 %s54, 1
        %s195 = smul.addr %s194, 8
        %s196 = scalar_lea.vmem [#allocation2], %s195
        %p197 = pneg %p67
        %p198 = pneg %p64
        %p199 = scmp.lt.s32.totalorder %s20, 2
        %s200 = scalar_select %p199, %s20, 2
        %s201 = smul.addr %s200, 8
        %s202 = scalar_lea.vmem %s2, %s201
        %p203 = pneg %p93
        %p204 = pneg %p90
        %p205 = pneg %p119
        %p206 = pneg %p116
        %s207 = sand.u32 %s106, 1
        %s208 = scalar_lea.sflag [#allocation4], %s207
        %s209 = sand.u32 %s106, 1
        %s210 = smul.addr %s209, 8
        %s211 = scalar_lea.vmem [#allocation5], %s210
        %p212 = scmp.lt.s32.totalorder %s20, 2
        %s213 = scalar_select %p212, %s20, 2
        %s214 = smul.addr %s213, 8
        %s215 = scalar_lea.vmem %s0, %s214
        %p216 = scmp.lt.s32.totalorder %s20, 2
        %s217 = scalar_select %p216, %s20, 2
        %s218 = smul.addr %s217, 8
        %s219 = scalar_lea.vmem %s2, %s218
        %v220 = vld [vmem:[%s215] sm:$0xff]
        %v221 = vld [vmem:[%s181] sm:$0xff]
        %v222 = vld [vmem:[%s219] sm:$0xff]
        %v223 = vsub.f32 %v220, %v221
        %v224 = vand.u32 2147483647, %v223
        %226 = vset.pattern.permute.xlu0 0
        %227 = vperm.xlu0 %226, %v222
        %v228 = vpop.permute.xlu0 %227
        %v230 = vmul.f32 %v228, %v224
        %v231 = vadd.f32 %v230, 0.0
        %232 = vst [vmem:[%s211] sm:$0xff] %v231
        %s233 = sand.u32 %s106, 1
        %s234 = scalar_lea.sflag [#allocation4], %s233
        %s235 = sand.u32 %s106, 1
        %s236 = smul.addr %s235, 8
        %s237 = scalar_lea.vmem [#allocation5], %s236
        // Predicated region
        $region37: #{tpu_custom_call.1} parent=31 // pred_check
          %p238 = pneg %p116
        $region38: #{tpu_custom_call.1} parent=31 // pred_check_branch
          %240 = sbr.rel (%p238) target = $region40
        $region39: #{tpu_custom_call.1} parent=31 // pred_region
          %s242 = ssub.s32 128, 128
          %243 = vsyncadd %s234, %s242
          %s244 = smul.addr %s20, 128
          %s245 = scalar_lea.hbm %s3, %s244
          %s247 = sshll.u32 %s237, 4
          %s248 = int_to_ptr.vmem [resolvable:$true] %s247
          %250 = dma.vmem_to_hbm [thread:$0]  %s248, 128, %s245, %s234
        $region40: #{tpu_custom_call.1} parent=31 // pred_fallthru
          _
      $region32: #{tpu_custom_call.1} parent=5 // pred_fallthru
        _
      %p251 = scmp.le.s32.totalorder 2, %s15
      // Predicated region
      $region41: #{tpu_custom_call.1} parent=5 // pred_check
        %p252 = pneg %p251
      $region42: #{tpu_custom_call.1} parent=5 // pred_check_branch
        %254 = sbr.rel (%p252) target = $region44
      $region43: #{tpu_custom_call.1} parent=5 // pred_region
        %s255 = ssub.s32 %s15, 2
        // Predicated region
        $region45: #{tpu_custom_call.1} parent=43 // pred_check
          %p256 = pneg %p122
        $region46: #{tpu_custom_call.1} parent=43 // pred_check_branch
          %258 = sbr.rel (%p256) target = $region48
        $region47: #{tpu_custom_call.1} parent=43 // pred_region
          %s259 = sand.u32 %s107, 1
          %s260 = scalar_lea.sflag [#allocation4], %s259
          %s261 = sand.u32 %s107, 1
          %s262 = smul.addr %s261, 8
          %s263 = scalar_lea.vmem [#allocation5], %s262
          %264 = dma.done %s260, 128
        $region48: #{tpu_custom_call.1} parent=43 // pred_fallthru
          _
      $region44: #{tpu_custom_call.1} parent=5 // pred_fallthru
        _
    $region6: #{tpu_custom_call.1} parent=1 // loop_footer
      %s19 = sadd.s32 1, %s15
    $region7: #{tpu_custom_call.1} parent=1 // loop_footer_branch
      %14 = sbr.rel target = $region3
    $region8: #{tpu_custom_call.1} parent=1 // loop_exit
      _
    %265 = vsyncpa [#allocation3], 1
    %s266 = scalar_lea.sflag [#allocation3], 1
    %267 = vsyncpa %s266, 1
    %268 = vsyncpa [#allocation4], 1
    %s269 = scalar_lea.sflag [#allocation4], 1
    %270 = vsyncpa %s269, 1

</llo_original>
